<compile_context>
chip_gen: v7x
topology: tpu7x:2x2x1
jax: 0.10.0
libtpu: 0.0.40
codegen_flags: <defaults>
</compile_context>

<pallas_src>
import jax
import jax.numpy as jnp
from jax.experimental import pallas as pl
from jax.experimental.pallas import tpu as pltpu


# ----------------------------------------------------------------------------
# small helpers
# ----------------------------------------------------------------------------
def _round_up(v, m):
    return ((v + m - 1) // m) * m


def _num_tensorcores():
    """2 for megacore-style chips (v4 / v5p / v7x), else 1 (v5e / v6e)."""
    try:
        kind = str(getattr(jax.devices()[0], "device_kind", "")).lower()
    except Exception:
        return 1
    if any(t in kind for t in ("v4", "v5p", "v7", "7x")):
        return 2
    return 1


def _vmem_cap_bytes():
    """~75% of physical VMEM: ~48 MiB on v7x (64 MiB), ~96 MiB on v5e/v6e."""
    cap = None
    try:
        cap = getattr(pltpu.get_tpu_info(), "vmem_capacity_bytes", None)
    except Exception:
        cap = None
    if not cap:
        cap = 64 * 1024 * 1024  # conservative fallback (v7x-sized)
    return int(cap) * 3 // 4


def _pick_tm(n, num_tc, max_tm=512):
    """Batch tile: <=max_tm rows, >=num_tc tiles when worthwhile, balanced."""
    k = pl.cdiv(n, max_tm)
    if num_tc > 1 and n >= 256:
        k = max(k, num_tc)          # give every TensorCore a batch tile
    if k <= 1:
        return n                    # single full-batch block (always legal)
    return max(_round_up(pl.cdiv(n, k), 8), 8)   # balanced -> minimal OOB waste


def _pick_tn(cp, max_tn=2048):
    """Class tile: full Cp when small, else a lane-dense (128*k) divisor."""
    if cp <= max_tn:
        return cp
    for cand in (2048, 1536, 1024, 768, 512, 384, 256, 128):
        if cand <= max_tn and cp % cand == 0:
            return cand
    return max_tn                   # cp is a multiple of 128, so unreachable


def _single_buffered(block_shape, index_map):
    """BlockSpec for a constant-index (resident) operand: 1 VMEM buffer."""
    try:
        return pl.BlockSpec(block_shape, index_map, pipeline_mode=pl.Buffered(1))
    except (TypeError, AttributeError):   # older jax without pipeline_mode
        return pl.BlockSpec(block_shape, index_map)


# ----------------------------------------------------------------------------
# kernel
# ----------------------------------------------------------------------------
def _classifier_kernel(x_ref, w_ref, b_ref, o_ref):
    # x_ref: (TM, F), w_ref: (F, TN) (wn scale already folded in),
    # b_ref: (1, TN) f32.  MXU matmul with f32 accumulation, bias add in f32.
    x = x_ref[...]
    if x.dtype != w_ref.dtype:            # e.g. f32 activations, bf16 weights
        x = x.astype(w_ref.dtype)
    y = jnp.dot(x, w_ref[...], preferred_element_type=jnp.float32)
    o_ref[...] = (y + b_ref[...]).astype(o_ref.dtype)


# ----------------------------------------------------------------------------
# one-time parameter prep (init time) + forward wrapper
# ----------------------------------------------------------------------------
def prepare_classifier_params(weight, bias, g=None, *, weight_dtype=None,
                              lane_multiple=128, eps=1e-12):
    """One-time parameter plumbing for the forward kernel.

    weight: (class_num, F) nn.Linear layout ('v' for weight_norm)
    bias:   (class_num,)
    g:      (class_num,) weight-norm magnitudes, or None for plain Linear.
    weight_dtype: optional storage dtype for the (F, Cp) weight (e.g.
      jnp.bfloat16 to halve weight HBM traffic / VMEM; f32 accumulation kept).

    Returns (w_t, bias2d, class_num):
      w_t    (F, Cp) transposed, wn scale folded in, class dim padded to 128*k
      bias2d (1, Cp) f32
    Padded classes have zero weight and zero bias -> logits exactly 0.
    """
    c, f = weight.shape
    cp = max(_round_up(c, lane_multiple), lane_multiple)

    w = weight.astype(jnp.float32)
    if g is not None:
        # weight_norm(dim=0): per-class scale g / ||v||, folded into the weight
        # here (free at init).  eps guards an all-zero row (PyTorch -> NaN).
        norm = jnp.sqrt(jnp.sum(jnp.square(w), axis=1, keepdims=True))
        w = w * (g.reshape(-1, 1).astype(jnp.float32) / jnp.maximum(norm, eps))

    w_t = jnp.pad(jnp.swapaxes(w, 0, 1), ((0, 0), (0, cp - c)))       # (F, Cp)
    w_t = w_t.astype(weight.dtype if weight_dtype is None else weight_dtype)
    bias2d = jnp.pad(bias.astype(jnp.float32), (0, cp - c)).reshape(1, cp)
    return w_t, bias2d, c


def feat_classifier_forward(x, params, *, slice_output=False, use_pallas=None,
                            max_tm=512, max_tn=2048):
    """x: (N, F); params from prepare_classifier_params.

    Returns the lane-padded (N, Cp) logits by default (padded classes are
    exactly 0; slice at the consumer so it fuses under jit), or (N, class_num)
    if slice_output=True for drop-in module semantics.
    """
    w_t, bias2d, class_num = params
    n, f = x.shape
    f_w, cp = w_t.shape
    assert f == f_w, "feature dim mismatch"

    flops = 2 * n * f * cp
    if use_pallas is None:
        # pallas_call fixed overhead dwarfs tiny classifier heads; let XLA fuse.
        use_pallas = flops >= (1 << 25)

    if not use_pallas:
        xw = x.astype(w_t.dtype) if x.dtype != w_t.dtype else x
        out = (jnp.dot(xw, w_t, preferred_element_type=jnp.float32)
               + bias2d).astype(x.dtype)
        return out[:, :class_num] if slice_output else out

    num_tc = _num_tensorcores()
    cap = _vmem_cap_bytes()
    x_isz = x.dtype.itemsize
    w_isz = w_t.dtype.itemsize
    o_isz = x.dtype.itemsize

    tm = _pick_tm(n, num_tc, max_tm=max_tm)
    tn = _pick_tn(cp, max_tn=max_tn)

    def working_set(tm_, tn_, w_bufs=2, b_bufs=2):
        return (2 * tm_ * f * x_isz            # x tiles, double-buffered
                + w_bufs * f * tn_ * w_isz     # weight tile(s)
                + b_bufs * tn_ * 4             # bias tile(s), f32
                + 2 * tm_ * tn_ * o_isz)       # output tiles, double-buffered

    # Shrink the class tile first (cheaper than losing batch-tile bandwidth),
    # then the batch tile, until the working set fits the per-generation cap.
    # F (the classifier bottleneck) is assumed small enough to stay untiled.
    while working_set(tm, tn) > cap and tn > 128:
        tn = max(_round_up(tn // 2, 128), 128)
    while working_set(tm, tn) > cap and tm > 128:
        tm = max(_round_up(tm // 2, 8), 128)

    gm = pl.cdiv(n, tm)
    gn = pl.cdiv(cp, tn)

    # Constant-index (resident) operands get a single VMEM buffer.
    if gn == 1:
        w_spec = _single_buffered((f, tn), lambda i, j: (0, j))
        b_spec = _single_buffered((1, tn), lambda i, j: (0, j))
        w_bufs = b_bufs = 1
    else:
        w_spec = pl.BlockSpec((f, tn), lambda i, j: (0, j))
        b_spec = pl.BlockSpec((1, tn), lambda i, j: (0, j))
        w_bufs = b_bufs = 2

    vmem_need = working_set(tm, tn, w_bufs, b_bufs)
    vmem_limit = max(min(int(vmem_need * 1.25) + (2 << 20), cap), 4 << 20)

    cost = pl.CostEstimate(
        flops=flops,
        transcendentals=0,
        bytes_accessed=(n * f * x_isz + f * cp * w_isz
                        + n * cp * o_isz + cp * 4),
    )

    out = pl.pallas_call(
        _classifier_kernel,
        out_shape=jax.ShapeDtypeStruct((n, cp), x.dtype),
        # grid: batch tiles outer, class tiles inner -> x tile (index (i, 0))
        # is reused (not re-DMA'd) across all class tiles of the same row.
        grid=(gm, gn),
        in_specs=[
            pl.BlockSpec((tm, f), lambda i, j: (i, 0)),   # x: pipelined
            w_spec,                                       # weight
            b_spec,                                       # bias (f32)
        ],
        out_specs=pl.BlockSpec((tm, tn), lambda i, j: (i, j)),
        compiler_params=pltpu.CompilerParams(
            dimension_semantics=("parallel", "parallel"),
            vmem_limit_bytes=vmem_limit,
        ),
        cost_estimate=cost,
    )(x, w_t, bias2d)

    return out[:, :class_num] if slice_output else out


# ----------------------------------------------------------------------------
# pure-JAX reference (mirrors the PyTorch module)
# ----------------------------------------------------------------------------
def _reference(x, weight, bias, g=None):
    w = weight.astype(jnp.float32)
    if g is not None:
        norm = jnp.sqrt(jnp.sum(w ** 2, axis=1, keepdims=True))
        w = w * (g.reshape(-1, 1) / norm)
    return x @ w.T + bias


if __name__ == "__main__":
    key = jax.random.PRNGKey(0)
    k_x, k_w, k_b, k_g = jax.random.split(key, 4)

    batch = 64
    bottleneck_dim = 256     # module default input width
    class_num = 10

    x = jax.random.normal(k_x, (batch, bottleneck_dim), dtype=jnp.float32)

    bound = 1.0 / (bottleneck_dim ** 0.5)   # nn.Linear uniform init scale
    weight = jax.random.uniform(k_w, (class_num, bottleneck_dim),
                                minval=-bound, maxval=bound, dtype=jnp.float32)
    bias = jax.random.uniform(k_b, (class_num,),
                              minval=-bound, maxval=bound, dtype=jnp.float32)
    # weight_norm magnitude g (PyTorch init: g = ||v|| per row; perturbed so
    # the 'wn' path is exercised non-trivially).
    g = jnp.sqrt(jnp.sum(weight ** 2, axis=1)) * jax.random.uniform(
        k_g, (class_num,), minval=0.5, maxval=1.5, dtype=jnp.float32)

    ok = True
    cases = [
        ("linear", None, None, 1e-4),      # plain nn.Linear, f32 weights
        ("wn", g, None, 1e-4),             # weight_norm, f32 weights
        ("wn_bf16w", g, jnp.bfloat16, 5e-2),  # bf16 weight storage, f32 acc
    ]
    for name, gg, wdt, tol in cases:
        params = prepare_classifier_params(weight, bias, gg, weight_dtype=wdt)
        # force the Pallas path (the tiny demo shapes would otherwise hit the
        # small-problem XLA bypass)
        out_padded = feat_classifier_forward(x, params, use_pallas=True)
        out_padded = jax.block_until_ready(out_padded)

        # consumer-side slice of the lane-padded logits (fuses under jit)
        out = out_padded[:, :class_num]
        ref = _reference(x, weight, bias, gg)
        if not jnp.allclose(out, ref, atol=tol, rtol=tol):
            ok = False
        # padded classes carry zero weight + zero bias -> exactly 0
        if class_num < out_padded.shape[1]:
            if not bool(jnp.all(out_padded[:, class_num:] == 0)):
                ok = False

    if ok:
        print("KERNEL_OK")
</pallas_src>

<mosaic_0001>
module attributes {stable_mosaic.version = 11 : i64} {
  func.func @_classifier_kernel(%arg0: i32, %arg1: i32, %arg2: memref<64x256xf32, #tpu.memory_space<vmem>>, %arg3: memref<256x128xf32, #tpu.memory_space<vmem>>, %arg4: memref<1x128xf32, #tpu.memory_space<vmem>>, %arg5: memref<64x128xf32, #tpu.memory_space<vmem>>) attributes {dimension_semantics = [#tpu.dimension_semantics<parallel>, #tpu.dimension_semantics<parallel>], iteration_bounds = array<i64: 1, 1>, scalar_prefetch = 0 : i64, scratch_operands = 0 : i64, tpu.core_type = #tpu.core_type<tc>, window_params = [{transform_indices = @transform_0, window_bounds = array<i64: 64, 256>}, {pipeline_mode = #tpu.pipeline_mode<synchronous>, transform_indices = @transform_1, window_bounds = array<i64: 256, 128>}, {pipeline_mode = #tpu.pipeline_mode<synchronous>, transform_indices = @transform_2, window_bounds = array<i64: 1, 128>}, {transform_indices = @transform_3, window_bounds = array<i64: 64, 128>}]} {
    %c0 = arith.constant 0 : index
    %c0_0 = arith.constant 0 : index
    %0 = vector.load %arg2[%c0, %c0_0] : memref<64x256xf32, #tpu.memory_space<vmem>>, vector<64x256xf32>
    %c0_1 = arith.constant 0 : index
    %c0_2 = arith.constant 0 : index
    %1 = vector.load %arg3[%c0_1, %c0_2] : memref<256x128xf32, #tpu.memory_space<vmem>>, vector<256x128xf32>
    %cst = arith.constant dense<0.000000e+00> : vector<64x128xf32>
    %2 = tpu.matmul %0, %1, %cst {dimension_numbers = #tpu.dot_dimension_numbers<[1], [0], [0], [1], [0, 0, 1, 1], [], []>} : vector<64x256xf32>, vector<256x128xf32>, vector<64x128xf32> -> vector<64x128xf32>
    %c0_3 = arith.constant 0 : index
    %c0_4 = arith.constant 0 : index
    %3 = vector.load %arg4[%c0_3, %c0_4] : memref<1x128xf32, #tpu.memory_space<vmem>>, vector<1x128xf32>
    %4 = vector.broadcast %3 : vector<1x128xf32> to vector<64x128xf32>
    %5 = arith.addf %2, %4 : vector<64x128xf32>
    %c0_5 = arith.constant 0 : index
    %c0_6 = arith.constant 0 : index
    %6 = vector.load %arg5[%c0_5, %c0_6] : memref<64x128xf32, #tpu.memory_space<vmem>>, vector<64x128xf32>
    tpu.vector_store %arg5[%c0_5, %c0_6], %5 {strides = array<i32>} : memref<64x128xf32, #tpu.memory_space<vmem>>, vector<64x128xf32>,
    return
  }
  func.func @transform_0(%arg0: i32, %arg1: i32) -> (i32, i32) {
    %c0_i32 = arith.constant 0 : i32
    %c0_i32_0 = arith.constant 0 : i32
    return %arg0, %c0_i32 : i32, i32
  }
  func.func @transform_1(%arg0: i32, %arg1: i32) -> (i32, i32) {
    %c0_i32 = arith.constant 0 : i32
    %c0_i32_0 = arith.constant 0 : i32
    return %c0_i32, %arg1 : i32, i32
  }
  func.func @transform_2(%arg0: i32, %arg1: i32) -> (i32, i32) {
    %c0_i32 = arith.constant 0 : i32
    %c0_i32_0 = arith.constant 0 : i32
    return %c0_i32, %arg1 : i32, i32
  }
  func.func @transform_3(%arg0: i32, %arg1: i32) -> (i32, i32) {
    %c0_i32 = arith.constant 0 : i32
    return %arg0, %arg1 : i32, i32
  }
}

</mosaic_0001>

<llo_original>
// kernel: tpu_custom_call.1
$region0: #{tpu_custom_call.1}
  #allocation0 [shape = 'u32[]', space=smem, size = 0x4, offset = 0x4, fixed_abs, tag = 'smem constant byte address 0x4 - core index']
  #allocation1 [shape = 'u32[144,128]{1,0:T(1,128)}', space=vmem, size = 0x12000, scoped, tag = 'internal scratch']
  %s0 = inlined_call_operand.hbm [shape: f32[64,256], index: 0, kind: input, shape index: {}]
  %s1 = inlined_call_operand.hbm [shape: f32[256,128], index: 1, kind: input, shape index: {}]
  %s2 = inlined_call_operand.vmem [shape: f32[1,128], index: 2, kind: input, shape index: {}]
  %s3 = inlined_call_operand.hbm [shape: f32[64,128], index: 3, kind: output, shape index: {}]
  %s4 = sld [smem:[#allocation0]]
  $region30: #{tpu_custom_call.1} parent=0
    _
  %s6 = ssub.s32 1, %s4
  %s7 = scalar_select 0, %s6, %s4
  $region1: #{tpu_custom_call.1} parent=0
    #allocation2 [shape = 'u8[65536]{0}', space=vmem, size = 0x10000, scoped, tag = 'input window, operand 0, single buffered']
    #allocation3 [shape = 's32[1]{0}', space=sflag, size = 0x4, scoped, tag = 'scoped memory for tpu_custom_call.1']
    #allocation4 [shape = 's32[1]{0}', space=sflag, size = 0x4, scoped, tag = 'scoped memory for tpu_custom_call.1']
    #allocation5 [shape = 'u8[131072]{0}', space=vmem, size = 0x20000, scoped, tag = 'input window, operand 1, single buffered']
    #allocation6 [shape = 's32[1]{0}', space=sflag, size = 0x4, scoped, tag = 'scoped memory for tpu_custom_call.1']
    #allocation7 [shape = 'u8[32768]{0}', space=vmem, size = 0x8000, scoped, tag = 'output window, operand 0, single buffered']
    %8 = vsyncpa [#allocation3], 0
    %9 = vsyncpa [#allocation6], 0
    %10 = vsyncpa [#allocation4], 0
    // Predicated region
    $region2: #{tpu_custom_call.1} parent=1 // pred_check
      _
    $region3: #{tpu_custom_call.1} parent=1 // pred_check_branch
      %12 = sbr.rel (0) target = $region5
    $region4: #{tpu_custom_call.1} parent=1 // pred_region
      %s14 = ssub.s32 2048, 2048
      %15 = vsyncadd [#allocation3], %s14
      %s16 = sshll.u32 [#allocation2], 4
      %s17 = int_to_ptr.vmem [resolvable:$true] %s16
      %22 = dma.hbm_to_vmem [thread:$0]  %s0, 2048, %s17, [#allocation3], 256, 256, 16
    $region5: #{tpu_custom_call.1} parent=1 // pred_fallthru
      _
    // Predicated region
    $region6: #{tpu_custom_call.1} parent=1 // pred_check
      _
    $region7: #{tpu_custom_call.1} parent=1 // pred_check_branch
      %24 = sbr.rel (0) target = $region9
    $region8: #{tpu_custom_call.1} parent=1 // pred_region
      %s26 = ssub.s32 4096, 4096
      %27 = vsyncadd [#allocation6], %s26
      %s28 = sshll.u32 [#allocation5], 4
      %s29 = int_to_ptr.vmem [resolvable:$true] %s28
      %34 = dma.hbm_to_vmem [thread:$0]  %s1, 4096, %s29, [#allocation6], 128, 128, 8
    $region9: #{tpu_custom_call.1} parent=1 // pred_fallthru
      _
    // Predicated region
    $region10: #{tpu_custom_call.1} parent=1 // pred_check
      _
    $region11: #{tpu_custom_call.1} parent=1 // pred_check_branch
      %36 = sbr.rel (0) target = $region13
    $region12: #{tpu_custom_call.1} parent=1 // pred_region
      _
    $region13: #{tpu_custom_call.1} parent=1 // pred_fallthru
      _
    // Predicated region
    $region14: #{tpu_custom_call.1} parent=1 // pred_check
      _
    $region15: #{tpu_custom_call.1} parent=1 // pred_check_branch
      %38 = sbr.rel (0) target = $region17
    $region16: #{tpu_custom_call.1} parent=1 // pred_region
      %39 = dma.done [#allocation3], 2048
    $region17: #{tpu_custom_call.1} parent=1 // pred_fallthru
      _
    // Predicated region
    $region18: #{tpu_custom_call.1} parent=1 // pred_check
      _
    $region19: #{tpu_custom_call.1} parent=1 // pred_check_branch
      %41 = sbr.rel (0) target = $region21
    $region20: #{tpu_custom_call.1} parent=1 // pred_region
      %42 = dma.done [#allocation6], 4096
    $region21: #{tpu_custom_call.1} parent=1 // pred_fallthru
      _
    %v43 = vld [vmem:[#allocation2] sm:$0xff]
    %v44 = vld [vmem:[#allocation2 + $0x8] sm:$0xff]
    %v45 = vld [vmem:[#allocation2 + $0x10] sm:$0xff]
    %v46 = vld [vmem:[#allocation2 + $0x18] sm:$0xff]
    %v47 = vld [vmem:[#allocation2 + $0x20] sm:$0xff]
    %v48 = vld [vmem:[#allocation2 + $0x28] sm:$0xff]
    %v49 = vld [vmem:[#allocation2 + $0x30] sm:$0xff]
    %v50 = vld [vmem:[#allocation2 + $0x38] sm:$0xff]
    %v51 = vld [vmem:[#allocation2 + $0x40] sm:$0xff]
    %v52 = vld [vmem:[#allocation2 + $0x48] sm:$0xff]
    %v53 = vld [vmem:[#allocation2 + $0x50] sm:$0xff]
    %v54 = vld [vmem:[#allocation2 + $0x58] sm:$0xff]
    %v55 = vld [vmem:[#allocation2 + $0x60] sm:$0xff]
    %v56 = vld [vmem:[#allocation2 + $0x68] sm:$0xff]
    %v57 = vld [vmem:[#allocation2 + $0x70] sm:$0xff]
    %v58 = vld [vmem:[#allocation2 + $0x78] sm:$0xff]
    %v59 = vld [vmem:[#allocation5] sm:$0xff]
    %v60 = vld [vmem:[#allocation5 + $0x8] sm:$0xff]
    %v61 = vld [vmem:[#allocation5 + $0x10] sm:$0xff]
    %v62 = vld [vmem:[#allocation5 + $0x18] sm:$0xff]
    %v63 = vld [vmem:[#allocation5 + $0x20] sm:$0xff]
    %v64 = vld [vmem:[#allocation5 + $0x28] sm:$0xff]
    %v65 = vld [vmem:[#allocation5 + $0x30] sm:$0xff]
    %v66 = vld [vmem:[#allocation5 + $0x38] sm:$0xff]
    %v67 = vld [vmem:[#allocation5 + $0x40] sm:$0xff]
    %v68 = vld [vmem:[#allocation5 + $0x48] sm:$0xff]
    %v69 = vld [vmem:[#allocation5 + $0x50] sm:$0xff]
    %v70 = vld [vmem:[#allocation5 + $0x58] sm:$0xff]
    %v71 = vld [vmem:[#allocation5 + $0x60] sm:$0xff]
    %v72 = vld [vmem:[#allocation5 + $0x68] sm:$0xff]
    %v73 = vld [vmem:[#allocation5 + $0x70] sm:$0xff]
    %v74 = vld [vmem:[#allocation5 + $0x78] sm:$0xff]
    %v75 = vld [vmem:[#allocation5 + $0x80] sm:$0xff]
    %v76 = vld [vmem:[#allocation5 + $0x88] sm:$0xff]
    %v77 = vld [vmem:[#allocation5 + $0x90] sm:$0xff]
    %v78 = vld [vmem:[#allocation5 + $0x98] sm:$0xff]
    %v79 = vld [vmem:[#allocation5 + $0xa0] sm:$0xff]
    %v80 = vld [vmem:[#allocation5 + $0xa8] sm:$0xff]
    %v81 = vld [vmem:[#allocation5 + $0xb0] sm:$0xff]
    %v82 = vld [vmem:[#allocation5 + $0xb8] sm:$0xff]
    %v83 = vld [vmem:[#allocation5 + $0xc0] sm:$0xff]
    %v84 = vld [vmem:[#allocation5 + $0xc8] sm:$0xff]
    %v85 = vld [vmem:[#allocation5 + $0xd0] sm:$0xff]
    %v86 = vld [vmem:[#allocation5 + $0xd8] sm:$0xff]
    %v87 = vld [vmem:[#allocation5 + $0xe0] sm:$0xff]
    %v88 = vld [vmem:[#allocation5 + $0xe8] sm:$0xff]
    %v89 = vld [vmem:[#allocation5 + $0xf0] sm:$0xff]
    %v90 = vld [vmem:[#allocation5 + $0xf8] sm:$0xff]
    %v91 = vld [vmem:[%s2] sm:$0x1]
    %v93 = vlaneseq
    %v94 = vshrl.u32 %v93, 7
    %v95 = vsub.s32 0, %v94
    %v96 = vrot.slane %v91, %v95
    %98 = vmatprep.subr.mxu0 0.0
    %99 = vmatpush1.msra.mxu0 %v59
    %100 = vmatprep.subr.mxu0 0.0
    %101 = vmatpush1.msra.mxu0 %v60
    %102 = vmatprep.subr.mxu0 0.0
    %103 = vmatpush1.msra.mxu0 %v61
    %104 = vmatprep.subr.mxu0 0.0
    %105 = vmatpush1.msra.mxu0 %v62
    %106 = vmatprep.subr.mxu0 0.0
    %107 = vmatpush1.msra.mxu0 %v63
    %108 = vmatprep.subr.mxu0 0.0
    %109 = vmatpush1.msra.mxu0 %v64
    %110 = vmatprep.subr.mxu0 0.0
    %111 = vmatpush1.msra.mxu0 %v65
    %112 = vmatprep.subr.mxu0 0.0
    %113 = vmatpush1.msra.mxu0 %v66
    %114 = vmatprep.subr.mxu0 0.0
    %115 = vmatpush1.msra.mxu0 %v67
    %116 = vmatprep.subr.mxu0 0.0
    %117 = vmatpush1.msra.mxu0 %v68
    %118 = vmatprep.subr.mxu0 0.0
    %119 = vmatpush1.msra.mxu0 %v69
    %120 = vmatprep.subr.mxu0 0.0
    %121 = vmatpush1.msra.mxu0 %v70
    %122 = vmatprep.subr.mxu0 0.0
    %123 = vmatpush1.msra.mxu0 %v71
    %124 = vmatprep.subr.mxu0 0.0
    %125 = vmatpush1.msra.mxu0 %v72
    %126 = vmatprep.subr.mxu0 0.0
    %127 = vmatpush1.msra.mxu0 %v73
    %128 = vmatprep.subr.mxu0 0.0
    %129 = vmatpush1.msra.mxu0 %v74
    %130 = vmatprep.subr.mxu0 0.0
    %131 = vmatpush1.msra.mxu0 %v75
    %132 = vmatprep.subr.mxu0 0.0
    %133 = vmatpush1.msra.mxu0 %v76
    %134 = vmatprep.subr.mxu0 0.0
    %135 = vmatpush1.msra.mxu0 %v77
    %136 = vmatprep.subr.mxu0 0.0
    %137 = vmatpush1.msra.mxu0 %v78
    %138 = vmatprep.subr.mxu0 0.0
    %139 = vmatpush1.msra.mxu0 %v79
    %140 = vmatprep.subr.mxu0 0.0
    %141 = vmatpush1.msra.mxu0 %v80
    %142 = vmatprep.subr.mxu0 0.0
    %143 = vmatpush1.msra.mxu0 %v81
    %144 = vmatprep.subr.mxu0 0.0
    %145 = vmatpush1.msra.mxu0 %v82
    %146 = vmatprep.subr.mxu0 0.0
    %147 = vmatpush1.msra.mxu0 %v83
    %148 = vmatprep.subr.mxu0 0.0
    %149 = vmatpush1.msra.mxu0 %v84
    %150 = vmatprep.subr.mxu0 0.0
    %151 = vmatpush1.msra.mxu0 %v85
    %152 = vmatprep.subr.mxu0 0.0
    %153 = vmatpush1.msra.mxu0 %v86
    %154 = vmatprep.subr.mxu0 0.0
    %155 = vmatpush1.msra.mxu0 %v87
    %156 = vmatprep.subr.mxu0 0.0
    %157 = vmatpush1.msra.mxu0 %v88
    %158 = vmatprep.subr.mxu0 0.0
    %159 = vmatpush1.msra.mxu0 %v89
    %160 = vmatprep.subr.mxu0 0.0
    %161 = vmatpush1.msra.mxu0 %v90
    %162 = vmatprep.mubr.f32.mxu0 %v44
    %163 = vmatmul.mubr.f32.gmra.mrb[0].mxu0 %v43
    %v164 = vpop.f32.mrb[0].mxu0
    %v165 = vadd.f32 %v96, %v164
    %v166 = vpop.f32.mrb[0].mxu0
    %167 = vmatprep.mubr.f32.mxu0 %v46
    %168 = vmatmul.mubr.f32.gmra.mrb[0].mxu0 %v45
    %v169 = vpop.f32.mrb[0].mxu0
    %v170 = vadd.f32 %v96, %v169
    %v171 = vpop.f32.mrb[0].mxu0
    %172 = vmatprep.mubr.f32.mxu0 %v48
    %173 = vmatmul.mubr.f32.gmra.mrb[0].mxu0 %v47
    %v174 = vpop.f32.mrb[0].mxu0
    %v175 = vadd.f32 %v96, %v174
    %v176 = vpop.f32.mrb[0].mxu0
    %177 = vmatprep.mubr.f32.mxu0 %v50
    %178 = vmatmul.mubr.f32.gmra.mrb[0].mxu0 %v49
    %v179 = vpop.f32.mrb[0].mxu0
    %v180 = vadd.f32 %v96, %v179
    %v181 = vpop.f32.mrb[0].mxu0
    %182 = vmatprep.mubr.f32.mxu0 %v52
    %183 = vmatmul.mubr.f32.gmra.mrb[0].mxu0 %v51
    %v184 = vpop.f32.mrb[0].mxu0
    %v185 = vadd.f32 %v96, %v184
    %v186 = vpop.f32.mrb[0].mxu0
    %187 = vmatprep.mubr.f32.mxu0 %v54
    %188 = vmatmul.mubr.f32.gmra.mrb[0].mxu0 %v53
    %v189 = vpop.f32.mrb[0].mxu0
    %v190 = vadd.f32 %v96, %v189
    %v191 = vpop.f32.mrb[0].mxu0
    %192 = vmatprep.mubr.f32.mxu0 %v56
    %193 = vmatmul.mubr.f32.gmra.mrb[0].mxu0 %v55
    %v194 = vpop.f32.mrb[0].mxu0
    %v195 = vadd.f32 %v96, %v194
    %v196 = vpop.f32.mrb[0].mxu0
    %197 = vmatprep.mubr.f32.mxu0 %v58
    %198 = vmatmul.mubr.f32.gmra.mrb[0].mxu0 %v57
    %v199 = vpop.f32.mrb[0].mxu0
    %v200 = vadd.f32 %v96, %v199
    %v201 = vpop.f32.mrb[0].mxu0
    %202 = vdwg.mxu0
    %203 = vst [vmem:[#allocation7] sm:$0xff] %v165
    %204 = vst [vmem:[#allocation7 + $0x8] sm:$0xff] %v170
    %205 = vst [vmem:[#allocation7 + $0x10] sm:$0xff] %v175
    %206 = vst [vmem:[#allocation7 + $0x18] sm:$0xff] %v180
    %207 = vst [vmem:[#allocation7 + $0x20] sm:$0xff] %v185
    %208 = vst [vmem:[#allocation7 + $0x28] sm:$0xff] %v190
    %209 = vst [vmem:[#allocation7 + $0x30] sm:$0xff] %v195
    %210 = vst [vmem:[#allocation7 + $0x38] sm:$0xff] %v200
    // Predicated region
    $region22: #{tpu_custom_call.1} parent=1 // pred_check
      _
    $region23: #{tpu_custom_call.1} parent=1 // pred_check_branch
      %212 = sbr.rel (0) target = $region25
    $region24: #{tpu_custom_call.1} parent=1 // pred_region
      %s214 = ssub.s32 1024, 1024
      %215 = vsyncadd [#allocation4], %s214
      %s216 = sshll.u32 [#allocation7], 4
      %s217 = int_to_ptr.vmem [resolvable:$true] %s216
      %222 = dma.vmem_to_hbm [thread:$0]  %s217, 1024, %s3, [#allocation4], 128, 128, 8
    $region25: #{tpu_custom_call.1} parent=1 // pred_fallthru
      _
    // Predicated region
    $region26: #{tpu_custom_call.1} parent=1 // pred_check
      _
    $region27: #{tpu_custom_call.1} parent=1 // pred_check_branch
      %224 = sbr.rel (0) target = $region29
    $region28: #{tpu_custom_call.1} parent=1 // pred_region
      %225 = dma.done [#allocation4], 1024
    $region29: #{tpu_custom_call.1} parent=1 // pred_fallthru
      _
    %226 = vsyncpa [#allocation3], 1
    %227 = vsyncpa [#allocation6], 1
    %228 = vsyncpa [#allocation4], 1

</llo_original>
